<compile_context>
chip_gen: v7x
topology: tpu7x:2x2x1
jax: 0.10.0
libtpu: 0.0.40
codegen_flags: <defaults>
</compile_context>

<pallas_src>
import jax
import jax.numpy as jnp
from jax.experimental import pallas as pl
from jax.experimental.pallas import tpu as pltpu


def mlp_kernel(xT_ref, w1t_ref, b1_ref, w2t_ref, b2_ref, w3t_ref, b3_ref, o_ref):
    # xT: (34, TB) bf16 -- batch on the lane axis.
    xT = xT_ref[...]

    # Layer 1: (64,34) @ (34,TB) -> (64,TB); f32 MXU accumulation, f32 bias + ReLU.
    h1 = jnp.dot(w1t_ref[...], xT, preferred_element_type=jnp.float32) + b1_ref[...]
    h1 = jnp.maximum(h1, 0.0).astype(jnp.bfloat16)
    # Dropout(0.2): identity in eval mode.

    # Layer 2: (32,64) @ (64,TB) -> (32,TB)
    h2 = jnp.dot(w2t_ref[...], h1, preferred_element_type=jnp.float32) + b2_ref[...]
    h2 = jnp.maximum(h2, 0.0).astype(jnp.bfloat16)
    # Dropout(0.2): identity in eval mode.

    # Layer 3: (2,32) @ (32,TB) -> (2,TB); lane-dense output slab.
    out = jnp.dot(w3t_ref[...], h2, preferred_element_type=jnp.float32) + b3_ref[...]
    o_ref[...] = out.astype(o_ref.dtype)


def _round_up(v, m):
    return ((v + m - 1) // m) * m


def neural_net_forward(x, params, *, batch_tile=8192, min_pallas_batch=256):
    """Forward pass of NeuralNet. x: (B, 34) or (34,), float32. Returns (B, 2) float32."""
    if x.ndim == 1:
        x = x[None, :]
    x = x.astype(jnp.float32)
    B, F = x.shape
    w1, b1, w2, b2, w3, b3 = params          # w: (in, out), b: (out,)
    H1, H2, C = w1.shape[1], w2.shape[1], w3.shape[1]

    # Tiny batch: Pallas launch overhead dominates -> plain JAX (bit-close to PyTorch f32 math).
    if B < max(min_pallas_batch, 128):
        h = jnp.maximum(x @ w1 + b1, 0.0)
        h = jnp.maximum(h @ w2 + b2, 0.0)
        return h @ w3 + b3

    # Feature-major packing: batch goes on the lane/N axis. Transpose + bf16 cast fuse into one
    # cheap XLA op; weight transposes/casts are tiny one-time ops (pre-pack in production).
    xT = x.T.astype(jnp.bfloat16)            # (34, B)
    w1t = w1.T.astype(jnp.bfloat16)          # (64, 34)
    w2t = w2.T.astype(jnp.bfloat16)          # (32, 64)
    w3t = w3.T.astype(jnp.bfloat16)          # (2, 32)
    b1c = b1.reshape(-1, 1).astype(jnp.float32)   # (64, 1)
    b2c = b2.reshape(-1, 1).astype(jnp.float32)   # (32, 1)
    b3c = b3.reshape(-1, 1).astype(jnp.float32)   # (2, 1)

    # Lane-axis batch tile: multiple of 128, >=2 grid steps (v7x megacore sharding),
    # capped to keep the double-buffered working set well under every chip's scoped VMEM.
    TB = min(batch_tile, max(128, _round_up(pl.cdiv(B, 2), 128)))
    grid = (pl.cdiv(B, TB),)

    # Resident (same block every step -> stays in VMEM, no re-DMA).
    def resident(a):
        return pl.BlockSpec(a.shape, lambda i: (0,) * a.ndim)

    flops = 2 * B * (F * H1 + H1 * H2 + H2 * C)
    weight_bytes = sum(int(a.size) * a.dtype.itemsize
                       for a in (w1t, b1c, w2t, b2c, w3t, b3c))
    bytes_accessed = B * F * 2 + B * C * 4 + weight_bytes

    outT = pl.pallas_call(
        mlp_kernel,
        out_shape=jax.ShapeDtypeStruct((C, B), jnp.float32),
        grid_spec=pl.GridSpec(
            grid=grid,
            in_specs=[
                pl.BlockSpec((F, TB), lambda i: (0, i)),   # x^T: tiled over batch (lanes)
                resident(w1t), resident(b1c),
                resident(w2t), resident(b2c),
                resident(w3t), resident(b3c),
            ],
            out_specs=pl.BlockSpec((C, TB), lambda i: (0, i)),
        ),
        compiler_params=pltpu.CompilerParams(
            dimension_semantics=("parallel",),          # megacore sharding on v7x
            vmem_limit_bytes=32 * 1024 * 1024,          # explicit: safe on v5e/v6e/v7x
        ),
        cost_estimate=pl.CostEstimate(
            flops=flops, transcendentals=0, bytes_accessed=bytes_accessed),
    )(xT, w1t, b1c, w2t, b2c, w3t, b3c)

    return outT.T                                        # (B, 2), tiny transpose


def init_params(key):
    """Deterministic init mimicking PyTorch nn.Linear default (U[-1/sqrt(fan_in), 1/sqrt(fan_in)])."""
    sizes = [(34, 64), (64, 32), (32, 2)]
    params = []
    for fan_in, fan_out in sizes:
        kw, kb, key = jax.random.split(key, 3)
        bound = 1.0 / jnp.sqrt(fan_in)
        w = jax.random.uniform(kw, (fan_in, fan_out), jnp.float32, -bound, bound)
        b = jax.random.uniform(kb, (fan_out,), jnp.float32, -bound, bound)
        params.extend([w, b])
    return tuple(params)


if __name__ == "__main__":
    key = jax.random.PRNGKey(0)
    k_x, k_p, k_b1, k_b2 = jax.random.split(key, 4)

    params = init_params(k_p)
    w1, b1, w2, b2, w3, b3 = params

    def ref_f32(xx):
        h = jnp.maximum(xx @ w1 + b1, 0.0)
        h = jnp.maximum(h @ w2 + b2, 0.0)
        return h @ w3 + b3

    # --- Pallas path: batch_tile=128 forces grid=(2,), exercising the multi-step pipeline,
    #     resident weights, and the lane-dense transposed output.
    xb = jax.random.normal(k_b1, (256, 34), jnp.float32)
    yb = neural_net_forward(xb, params, batch_tile=128)
    jax.block_until_ready(yb)
    assert yb.shape == (256, 2)
    # bf16 matmul operands vs. f32 reference -> loose tolerance.
    assert jnp.allclose(yb, ref_f32(xb), atol=5e-2, rtol=5e-2), "pallas path mismatch vs reference"

    # --- Ragged batch (not a multiple of the 128-lane tile) -> partial final block.
    xr = jax.random.normal(k_b2, (300, 34), jnp.float32)
    yr = neural_net_forward(xr, params)
    jax.block_until_ready(yr)
    assert yr.shape == (300, 2)
    assert jnp.allclose(yr, ref_f32(xr), atol=5e-2, rtol=5e-2), "ragged pallas path mismatch"

    # --- Tiny-batch fallback path (B=2), matches PyTorch f32 math closely.
    x2 = jax.random.normal(k_x, (2, 34), jnp.float32)
    y2 = neural_net_forward(x2, params)
    jax.block_until_ready(y2)
    assert y2.shape == (2, 2)
    assert jnp.allclose(y2, ref_f32(x2), atol=1e-5), "small-batch path mismatch"

    # --- 1-D input path (dim()==1 -> unsqueeze(0)).
    y1 = neural_net_forward(x2[0], params)
    jax.block_until_ready(y1)
    assert y1.shape == (1, 2)
    assert jnp.allclose(y1[0], ref_f32(x2)[0], atol=1e-5), "1-D input path mismatch"

    print("KERNEL_OK")
</pallas_src>

<mosaic_0001>
module attributes {stable_mosaic.version = 11 : i64} {
  func.func @mlp_kernel(%arg0: i32, %arg1: memref<34x128xbf16, #tpu.memory_space<vmem>>, %arg2: memref<64x34xbf16, #tpu.memory_space<vmem>>, %arg3: memref<64x1xf32, #tpu.memory_space<vmem>>, %arg4: memref<32x64xbf16, #tpu.memory_space<vmem>>, %arg5: memref<32x1xf32, #tpu.memory_space<vmem>>, %arg6: memref<2x32xbf16, #tpu.memory_space<vmem>>, %arg7: memref<2x1xf32, #tpu.memory_space<vmem>>, %arg8: memref<2x128xf32, #tpu.memory_space<vmem>>) attributes {dimension_semantics = [#tpu.dimension_semantics<parallel>], iteration_bounds = array<i64: 2>, scalar_prefetch = 0 : i64, scratch_operands = 0 : i64, tpu.core_type = #tpu.core_type<tc>, window_params = [{transform_indices = @transform_0, window_bounds = array<i64: 34, 128>}, {pipeline_mode = #tpu.pipeline_mode<synchronous>, transform_indices = @transform_1, window_bounds = array<i64: 64, 34>}, {pipeline_mode = #tpu.pipeline_mode<synchronous>, transform_indices = @transform_2, window_bounds = array<i64: 64, 1>}, {pipeline_mode = #tpu.pipeline_mode<synchronous>, transform_indices = @transform_3, window_bounds = array<i64: 32, 64>}, {pipeline_mode = #tpu.pipeline_mode<synchronous>, transform_indices = @transform_4, window_bounds = array<i64: 32, 1>}, {pipeline_mode = #tpu.pipeline_mode<synchronous>, transform_indices = @transform_5, window_bounds = array<i64: 2, 32>}, {pipeline_mode = #tpu.pipeline_mode<synchronous>, transform_indices = @transform_6, window_bounds = array<i64: 2, 1>}, {transform_indices = @transform_7, window_bounds = array<i64: 2, 128>}]} {
    %c0 = arith.constant 0 : index
    %c0_0 = arith.constant 0 : index
    %0 = vector.load %arg1[%c0, %c0_0] : memref<34x128xbf16, #tpu.memory_space<vmem>>, vector<34x128xbf16>
    %c0_1 = arith.constant 0 : index
    %c0_2 = arith.constant 0 : index
    %1 = vector.load %arg2[%c0_1, %c0_2] : memref<64x34xbf16, #tpu.memory_space<vmem>>, vector<64x34xbf16>
    %cst = arith.constant dense<0.000000e+00> : vector<64x128xf32>
    %2 = tpu.matmul %1, %0, %cst {dimension_numbers = #tpu.dot_dimension_numbers<[1], [0], [0], [1], [0, 0, 1, 1], [], []>} : vector<64x34xbf16>, vector<34x128xbf16>, vector<64x128xf32> -> vector<64x128xf32>
    %c0_3 = arith.constant 0 : index
    %c0_4 = arith.constant 0 : index
    %3 = vector.load %arg3[%c0_3, %c0_4] : memref<64x1xf32, #tpu.memory_space<vmem>>, vector<64x1xf32>
    %4 = vector.broadcast %3 : vector<64x1xf32> to vector<64x128xf32>
    %5 = arith.addf %2, %4 : vector<64x128xf32>
    %cst_5 = arith.constant 0.000000e+00 : f32
    %6 = vector.broadcast %cst_5 : f32 to vector<64x128xf32>
    %7 = arith.maximumf %5, %6 : vector<64x128xf32>
    %8 = arith.truncf %7 : vector<64x128xf32> to vector<64x128xbf16>
    %c0_6 = arith.constant 0 : index
    %c0_7 = arith.constant 0 : index
    %9 = vector.load %arg4[%c0_6, %c0_7] : memref<32x64xbf16, #tpu.memory_space<vmem>>, vector<32x64xbf16>
    %cst_8 = arith.constant dense<0.000000e+00> : vector<32x128xf32>
    %10 = tpu.matmul %9, %8, %cst_8 {dimension_numbers = #tpu.dot_dimension_numbers<[1], [0], [0], [1], [0, 0, 1, 1], [], []>} : vector<32x64xbf16>, vector<64x128xbf16>, vector<32x128xf32> -> vector<32x128xf32>
    %c0_9 = arith.constant 0 : index
    %c0_10 = arith.constant 0 : index
    %11 = vector.load %arg5[%c0_9, %c0_10] : memref<32x1xf32, #tpu.memory_space<vmem>>, vector<32x1xf32>
    %12 = vector.broadcast %11 : vector<32x1xf32> to vector<32x128xf32>
    %13 = arith.addf %10, %12 : vector<32x128xf32>
    %cst_11 = arith.constant 0.000000e+00 : f32
    %14 = vector.broadcast %cst_11 : f32 to vector<32x128xf32>
    %15 = arith.maximumf %13, %14 : vector<32x128xf32>
    %16 = arith.truncf %15 : vector<32x128xf32> to vector<32x128xbf16>
    %c0_12 = arith.constant 0 : index
    %c0_13 = arith.constant 0 : index
    %17 = vector.load %arg6[%c0_12, %c0_13] : memref<2x32xbf16, #tpu.memory_space<vmem>>, vector<2x32xbf16>
    %cst_14 = arith.constant dense<0.000000e+00> : vector<2x128xf32>
    %18 = tpu.matmul %17, %16, %cst_14 {dimension_numbers = #tpu.dot_dimension_numbers<[1], [0], [0], [1], [0, 0, 1, 1], [], []>} : vector<2x32xbf16>, vector<32x128xbf16>, vector<2x128xf32> -> vector<2x128xf32>
    %c0_15 = arith.constant 0 : index
    %c0_16 = arith.constant 0 : index
    %19 = vector.load %arg7[%c0_15, %c0_16] : memref<2x1xf32, #tpu.memory_space<vmem>>, vector<2x1xf32>
    %20 = vector.broadcast %19 : vector<2x1xf32> to vector<2x128xf32>
    %21 = arith.addf %18, %20 : vector<2x128xf32>
    %c0_17 = arith.constant 0 : index
    %c0_18 = arith.constant 0 : index
    %22 = vector.load %arg8[%c0_17, %c0_18] : memref<2x128xf32, #tpu.memory_space<vmem>>, vector<2x128xf32>
    tpu.vector_store %arg8[%c0_17, %c0_18], %21 {strides = array<i32>} : memref<2x128xf32, #tpu.memory_space<vmem>>, vector<2x128xf32>,
    return
  }
  func.func @transform_0(%arg0: i32) -> (i32, i32) {
    %c0_i32 = arith.constant 0 : i32
    %c0_i32_0 = arith.constant 0 : i32
    return %c0_i32, %arg0 : i32, i32
  }
  func.func @transform_1(%arg0: i32) -> (i32, i32) {
    %c0_i32 = arith.constant 0 : i32
    %c0_i32_0 = arith.constant 0 : i32
    %c0_i32_1 = arith.constant 0 : i32
    return %c0_i32, %c0_i32_0 : i32, i32
  }
  func.func @transform_2(%arg0: i32) -> (i32, i32) {
    %c0_i32 = arith.constant 0 : i32
    %c0_i32_0 = arith.constant 0 : i32
    %c0_i32_1 = arith.constant 0 : i32
    return %c0_i32, %c0_i32_0 : i32, i32
  }
  func.func @transform_3(%arg0: i32) -> (i32, i32) {
    %c0_i32 = arith.constant 0 : i32
    %c0_i32_0 = arith.constant 0 : i32
    %c0_i32_1 = arith.constant 0 : i32
    return %c0_i32, %c0_i32_0 : i32, i32
  }
  func.func @transform_4(%arg0: i32) -> (i32, i32) {
    %c0_i32 = arith.constant 0 : i32
    %c0_i32_0 = arith.constant 0 : i32
    %c0_i32_1 = arith.constant 0 : i32
    return %c0_i32, %c0_i32_0 : i32, i32
  }
  func.func @transform_5(%arg0: i32) -> (i32, i32) {
    %c0_i32 = arith.constant 0 : i32
    %c0_i32_0 = arith.constant 0 : i32
    %c0_i32_1 = arith.constant 0 : i32
    return %c0_i32, %c0_i32_0 : i32, i32
  }
  func.func @transform_6(%arg0: i32) -> (i32, i32) {
    %c0_i32 = arith.constant 0 : i32
    %c0_i32_0 = arith.constant 0 : i32
    %c0_i32_1 = arith.constant 0 : i32
    return %c0_i32, %c0_i32_0 : i32, i32
  }
  func.func @transform_7(%arg0: i32) -> (i32, i32) {
    %c0_i32 = arith.constant 0 : i32
    %c0_i32_0 = arith.constant 0 : i32
    return %c0_i32, %arg0 : i32, i32
  }
}

</mosaic_0001>

<llo_original>
// kernel: tpu_custom_call.1
$region0: #{tpu_custom_call.1}
  #allocation0 [shape = 'u32[]', space=smem, size = 0x4, offset = 0x4, fixed_abs, tag = 'smem constant byte address 0x4 - core index']
  #allocation1 [shape = 'u32[144,128]{1,0:T(1,128)}', space=vmem, size = 0x12000, scoped, tag = 'internal scratch']
  %s0 = inlined_call_operand.vmem [shape: bf16[34,256], index: 0, kind: input, shape index: {}]
  %s1 = inlined_call_operand.vmem [shape: bf16[64,34], index: 1, kind: input, shape index: {}]
  %s2 = inlined_call_operand.vmem [shape: f32[64,1], index: 2, kind: input, shape index: {}]
  %s3 = inlined_call_operand.vmem [shape: bf16[32,64], index: 3, kind: input, shape index: {}]
  %s4 = inlined_call_operand.vmem [shape: f32[32,1], index: 4, kind: input, shape index: {}]
  %s5 = inlined_call_operand.vmem [shape: bf16[2,32], index: 5, kind: input, shape index: {}]
  %s6 = inlined_call_operand.vmem [shape: f32[2,1], index: 6, kind: input, shape index: {}]
  %s7 = inlined_call_operand.hbm [shape: f32[2,256], index: 7, kind: output, shape index: {}]
  %s8 = sld [smem:[#allocation0]]
  $region102: #{tpu_custom_call.1} parent=0
    _
  %s10 = ssub.s32 1, %s8
  %s11 = scalar_select 0, %s10, %s8
  $region1: #{tpu_custom_call.1} parent=0
    #allocation2 [shape = 'u8[20480]{0}', space=vmem, size = 0x5000, scoped, tag = 'input window, operand 0']
    #allocation3 [shape = 'u8[2048]{0}', space=vmem, size = 0x800, scoped, tag = 'output window, operand 0']
    #allocation4 [shape = 's32[2]{0}', space=sflag, size = 0x8, scoped, tag = 'scoped memory for tpu_custom_call.1']
    %12 = vsyncpa [#allocation4], 0
    %s13 = scalar_lea.sflag [#allocation4], 1
    %14 = vsyncpa %s13, 0
    loop: start=0, step=1, limit=4
    $region2: #{tpu_custom_call.1} parent=1 // loop_pre_header
      _
    $region3: #{tpu_custom_call.1} parent=1 // loop_header
      %s16 = sphi 0, %s20
      %p17 = scmp.ge.s32.totalorder %s16, 4
      %s26 = sphi 0, %s28
      %s29 = sphi 0, %s26
      %s30 = sphi 0, %s29
      %s46 = sphi 0, %s30
      %s50 = sphi 0, %s50
      %s52 = sphi 0, %s50
      %s53 = sphi 0, %s52
      %s67 = sphi 0, %s53
      %s71 = sphi 0, %s71
      %s73 = sphi 0, %s71
      %s74 = sphi 0, %s73
      %s88 = sphi 0, %s74
      %s92 = sphi 0, %s92
      %s94 = sphi 0, %s92
      %s95 = sphi 0, %s94
      %s109 = sphi 0, %s95
      %s113 = sphi 0, %s113
      %s115 = sphi 0, %s113
      %s116 = sphi 0, %s115
      %s130 = sphi 0, %s116
      %s134 = sphi 0, %s134
      %s136 = sphi 0, %s134
      %s137 = sphi 0, %s136
      %s151 = sphi 0, %s137
      %s155 = sphi 0, %s155
      %s157 = sphi 0, %s155
      %s158 = sphi 0, %s157
      %s172 = sphi 0, %s158
      %s178 = sphi 0, %s180
      %s181 = sphi 0, %s178
      %s182 = sphi 0, %s181
      %s198 = sphi 0, %s182
    $region4: #{tpu_custom_call.1} parent=1 // loop_header_branch
      %19 = sbr.rel (%p17) target = $region8
    $region5: #{tpu_custom_call.1} parent=1 // loop_body
      %s21 = ssub.s32 %s16, 1
      %s22 = ssub.s32 %s16, 2
      %s23 = sadd.s32 %s16, 1
      %s24 = ssub.s32 %s16, %s23
      %p25 = scmp.eq.s32.totalorder %s24, 0
      %s27 = sadd.s32 %s26, 1
      %s28 = scalar_select %p25, %s26, %s27
      %p31 = pneg %p25
      %p32 = scmp.eq.s32.totalorder %s16, 1
      %p33 = por %p31, %p32
      %p34 = scmp.ne.s32.totalorder %s26, %s29
      %p35 = scmp.eq.s32.totalorder %s16, 0
      %p36 = por %p34, %p35
      %p37 = scmp.ne.s32.totalorder %s26, %s29
      %p38 = scmp.eq.s32.totalorder %s21, 1
      %p39 = por %p37, %p38
      %p40 = scmp.ne.s32.totalorder %s29, %s30
      %p41 = scmp.eq.s32.totalorder %s21, 0
      %p42 = por %p40, %p41
      %p43 = scmp.ne.s32.totalorder %s29, %s30
      %p44 = scmp.eq.s32.totalorder %s22, 1
      %p45 = por %p43, %p44
      %p47 = scmp.ne.s32.totalorder %s30, %s46
      %p48 = scmp.eq.s32.totalorder %s22, 0
      %p49 = por %p47, %p48
      %s51 = sadd.s32 %s50, 1
      %p54 = scmp.eq.s32.totalorder %s16, 1
      %p55 = scmp.ne.s32.totalorder %s50, %s52
      %p56 = scmp.eq.s32.totalorder %s16, 0
      %p57 = por %p55, %p56
      %p58 = scmp.ne.s32.totalorder %s50, %s52
      %p59 = scmp.eq.s32.totalorder %s21, 1
      %p60 = por %p58, %p59
      %p61 = scmp.ne.s32.totalorder %s52, %s53
      %p62 = scmp.eq.s32.totalorder %s21, 0
      %p63 = por %p61, %p62
      %p64 = scmp.ne.s32.totalorder %s52, %s53
      %p65 = scmp.eq.s32.totalorder %s22, 1
      %p66 = por %p64, %p65
      %p68 = scmp.ne.s32.totalorder %s53, %s67
      %p69 = scmp.eq.s32.totalorder %s22, 0
      %p70 = por %p68, %p69
      %s72 = sadd.s32 %s71, 1
      %p75 = scmp.eq.s32.totalorder %s16, 1
      %p76 = scmp.ne.s32.totalorder %s71, %s73
      %p77 = scmp.eq.s32.totalorder %s16, 0
      %p78 = por %p76, %p77
      %p79 = scmp.ne.s32.totalorder %s71, %s73
      %p80 = scmp.eq.s32.totalorder %s21, 1
      %p81 = por %p79, %p80
      %p82 = scmp.ne.s32.totalorder %s73, %s74
      %p83 = scmp.eq.s32.totalorder %s21, 0
      %p84 = por %p82, %p83
      %p85 = scmp.ne.s32.totalorder %s73, %s74
      %p86 = scmp.eq.s32.totalorder %s22, 1
      %p87 = por %p85, %p86
      %p89 = scmp.ne.s32.totalorder %s74, %s88
      %p90 = scmp.eq.s32.totalorder %s22, 0
      %p91 = por %p89, %p90
      %s93 = sadd.s32 %s92, 1
      %p96 = scmp.eq.s32.totalorder %s16, 1
      %p97 = scmp.ne.s32.totalorder %s92, %s94
      %p98 = scmp.eq.s32.totalorder %s16, 0
      %p99 = por %p97, %p98
      %p100 = scmp.ne.s32.totalorder %s92, %s94
      %p101 = scmp.eq.s32.totalorder %s21, 1
      %p102 = por %p100, %p101
      %p103 = scmp.ne.s32.totalorder %s94, %s95
      %p104 = scmp.eq.s32.totalorder %s21, 0
      %p105 = por %p103, %p104
      %p106 = scmp.ne.s32.totalorder %s94, %s95
      %p107 = scmp.eq.s32.totalorder %s22, 1
      %p108 = por %p106, %p107
      %p110 = scmp.ne.s32.totalorder %s95, %s109
      %p111 = scmp.eq.s32.totalorder %s22, 0
      %p112 = por %p110, %p111
      %s114 = sadd.s32 %s113, 1
      %p117 = scmp.eq.s32.totalorder %s16, 1
      %p118 = scmp.ne.s32.totalorder %s113, %s115
      %p119 = scmp.eq.s32.totalorder %s16, 0
      %p120 = por %p118, %p119
      %p121 = scmp.ne.s32.totalorder %s113, %s115
      %p122 = scmp.eq.s32.totalorder %s21, 1
      %p123 = por %p121, %p122
      %p124 = scmp.ne.s32.totalorder %s115, %s116
      %p125 = scmp.eq.s32.totalorder %s21, 0
      %p126 = por %p124, %p125
      %p127 = scmp.ne.s32.totalorder %s115, %s116
      %p128 = scmp.eq.s32.totalorder %s22, 1
      %p129 = por %p127, %p128
      %p131 = scmp.ne.s32.totalorder %s116, %s130
      %p132 = scmp.eq.s32.totalorder %s22, 0
      %p133 = por %p131, %p132
      %s135 = sadd.s32 %s134, 1
      %p138 = scmp.eq.s32.totalorder %s16, 1
      %p139 = scmp.ne.s32.totalorder %s134, %s136
      %p140 = scmp.eq.s32.totalorder %s16, 0
      %p141 = por %p139, %p140
      %p142 = scmp.ne.s32.totalorder %s134, %s136
      %p143 = scmp.eq.s32.totalorder %s21, 1
      %p144 = por %p142, %p143
      %p145 = scmp.ne.s32.totalorder %s136, %s137
      %p146 = scmp.eq.s32.totalorder %s21, 0
      %p147 = por %p145, %p146
      %p148 = scmp.ne.s32.totalorder %s136, %s137
      %p149 = scmp.eq.s32.totalorder %s22, 1
      %p150 = por %p148, %p149
      %p152 = scmp.ne.s32.totalorder %s137, %s151
      %p153 = scmp.eq.s32.totalorder %s22, 0
      %p154 = por %p152, %p153
      %s156 = sadd.s32 %s155, 1
      %p159 = scmp.eq.s32.totalorder %s16, 1
      %p160 = scmp.ne.s32.totalorder %s155, %s157
      %p161 = scmp.eq.s32.totalorder %s16, 0
      %p162 = por %p160, %p161
      %p163 = scmp.ne.s32.totalorder %s155, %s157
      %p164 = scmp.eq.s32.totalorder %s21, 1
      %p165 = por %p163, %p164
      %p166 = scmp.ne.s32.totalorder %s157, %s158
      %p167 = scmp.eq.s32.totalorder %s21, 0
      %p168 = por %p166, %p167
      %p169 = scmp.ne.s32.totalorder %s157, %s158
      %p170 = scmp.eq.s32.totalorder %s22, 1
      %p171 = por %p169, %p170
      %p173 = scmp.ne.s32.totalorder %s158, %s172
      %p174 = scmp.eq.s32.totalorder %s22, 0
      %p175 = por %p173, %p174
      %s176 = ssub.s32 %s16, %s23
      %p177 = scmp.eq.s32.totalorder %s176, 0
      %s179 = sadd.s32 %s178, 1
      %s180 = scalar_select %p177, %s178, %s179
      %p183 = pneg %p177
      %p184 = scmp.eq.s32.totalorder %s16, 1
      %p185 = por %p183, %p184
      %p186 = scmp.ne.s32.totalorder %s178, %s181
      %p187 = scmp.eq.s32.totalorder %s16, 0
      %p188 = por %p186, %p187
      %p189 = scmp.ne.s32.totalorder %s178, %s181
      %p190 = scmp.eq.s32.totalorder %s21, 1
      %p191 = por %p189, %p190
      %p192 = scmp.ne.s32.totalorder %s181, %s182
      %p193 = scmp.eq.s32.totalorder %s21, 0
      %p194 = por %p192, %p193
      %p195 = scmp.ne.s32.totalorder %s181, %s182
      %p196 = scmp.eq.s32.totalorder %s22, 1
      %p197 = por %p195, %p196
      %p199 = scmp.ne.s32.totalorder %s182, %s198
      %p200 = scmp.eq.s32.totalorder %s22, 0
      %p201 = por %p199, %p200
      %p202 = scmp.le.s32.totalorder 1, %s16
      %p203 = scmp.lt.s32.totalorder %s16, 3
      %p204 = pnand %p202, %p203
      %p205 = pneg %p204
      // Predicated region
      $region9: #{tpu_custom_call.1} parent=5 // pred_check
        _
      $region10: #{tpu_custom_call.1} parent=5 // pred_check_branch
        %207 = sbr.rel (%p204) target = $region12
      $region11: #{tpu_custom_call.1} parent=5 // pred_region
        %s208 = ssub.s32 %s16, 1
        // Predicated region
        $region13: #{tpu_custom_call.1} parent=11 // pred_check
          %p209 = pneg %p63
        $region14: #{tpu_custom_call.1} parent=11 // pred_check_branch
          %211 = sbr.rel (%p209) target = $region16
        $region15: #{tpu_custom_call.1} parent=11 // pred_region
          _
        $region16: #{tpu_custom_call.1} parent=11 // pred_fallthru
          _
        // Predicated region
        $region17: #{tpu_custom_call.1} parent=11 // pred_check
          %p212 = pneg %p84
        $region18: #{tpu_custom_call.1} parent=11 // pred_check_branch
          %214 = sbr.rel (%p212) target = $region20
        $region19: #{tpu_custom_call.1} parent=11 // pred_region
          _
        $region20: #{tpu_custom_call.1} parent=11 // pred_fallthru
          _
        // Predicated region
        $region21: #{tpu_custom_call.1} parent=11 // pred_check
          %p215 = pneg %p105
        $region22: #{tpu_custom_call.1} parent=11 // pred_check_branch
          %217 = sbr.rel (%p215) target = $region24
        $region23: #{tpu_custom_call.1} parent=11 // pred_region
          _
        $region24: #{tpu_custom_call.1} parent=11 // pred_fallthru
          _
        // Predicated region
        $region25: #{tpu_custom_call.1} parent=11 // pred_check
          %p218 = pneg %p126
        $region26: #{tpu_custom_call.1} parent=11 // pred_check_branch
          %220 = sbr.rel (%p218) target = $region28
        $region27: #{tpu_custom_call.1} parent=11 // pred_region
          _
        $region28: #{tpu_custom_call.1} parent=11 // pred_fallthru
          _
        // Predicated region
        $region29: #{tpu_custom_call.1} parent=11 // pred_check
          %p221 = pneg %p147
        $region30: #{tpu_custom_call.1} parent=11 // pred_check_branch
          %223 = sbr.rel (%p221) target = $region32
        $region31: #{tpu_custom_call.1} parent=11 // pred_region
          _
        $region32: #{tpu_custom_call.1} parent=11 // pred_fallthru
          _
        // Predicated region
        $region33: #{tpu_custom_call.1} parent=11 // pred_check
          %p224 = pneg %p168
        $region34: #{tpu_custom_call.1} parent=11 // pred_check_branch
          %226 = sbr.rel (%p224) target = $region36
        $region35: #{tpu_custom_call.1} parent=11 // pred_region
          _
        $region36: #{tpu_custom_call.1} parent=11 // pred_fallthru
          _
      $region12: #{tpu_custom_call.1} parent=5 // pred_fallthru
        _
      %p227 = scmp.lt.s32.totalorder %s16, 2
      // Predicated region
      $region37: #{tpu_custom_call.1} parent=5 // pred_check
        %p228 = pneg %p227
      $region38: #{tpu_custom_call.1} parent=5 // pred_check_branch
        %230 = sbr.rel (%p228) target = $region40
      $region39: #{tpu_custom_call.1} parent=5 // pred_region
        // Predicated region
        $region41: #{tpu_custom_call.1} parent=39 // pred_check
          %p231 = pneg %p36
        $region42: #{tpu_custom_call.1} parent=39 // pred_check_branch
          %233 = sbr.rel (%p231) target = $region44
        $region43: #{tpu_custom_call.1} parent=39 // pred_region
          %s234 = sand.u32 %s26, 1
          %s235 = sand.u32 %s26, 1
          %s236 = smul.addr %s235, 20
          %s237 = scalar_lea.vmem [#allocation2], %s236
          %s238 = smul.addr %s16, 4
          %s239 = scalar_lea.vmem %s0, %s238
          // Predicated region
          $region45: #{tpu_custom_call.1} parent=43 // pred_check
            _
          $region46: #{tpu_custom_call.1} parent=43 // pred_check_branch
            %241 = sbr.rel (0) target = $region48
          $region47: #{tpu_custom_call.1} parent=43 // pred_region
            // Predicated region
            $region49: #{tpu_custom_call.1} parent=47 // pred_check
              _
            $region50: #{tpu_custom_call.1} parent=47 // pred_check_branch
              %243 = sbr.rel target = $region52
            $region51: #{tpu_custom_call.1} parent=47 // pred_region
              // Predicated region
              $region64: #{tpu_custom_call.1} parent=51 // pred_check
                _
              $region65: #{tpu_custom_call.1} parent=51 // pred_check_branch
                %266 = sbr.rel (0) target = $region67
              $region66: #{tpu_custom_call.1} parent=51 // pred_region
                loop: start=0, step=1, limit=1
                $region68: #{tpu_custom_call.1} parent=66 // loop_pre_header
                  _
                $region69: #{tpu_custom_call.1} parent=66 // loop_header
                  %s268 = sphi 0, %s272
                  %p269 = scmp.ge.s32.totalorder %s268, 1
                  %s273 = sphi %s239, %s239
                  %s274 = sphi %s237, %s237
                $region70: #{tpu_custom_call.1} parent=66 // loop_header_branch
                  %271 = sbr.rel (%p269) target = $region74
                $region71: #{tpu_custom_call.1} parent=66 // loop_body
                  _
                $region72: #{tpu_custom_call.1} parent=66 // loop_footer
                  %s272 = sadd.s32 1, %s268
                $region73: #{tpu_custom_call.1} parent=66 // loop_footer_branch
                  %267 = sbr.rel target = $region69
                $region74: #{tpu_custom_call.1} parent=66 // loop_exit
                  _
                loop: start=0, step=1, limit=1
                $region75: #{tpu_custom_call.1} parent=66 // loop_pre_header
                  _
                $region76: #{tpu_custom_call.1} parent=66 // loop_header
                  %s277 = sphi 0, %s281
                  %p278 = scmp.ge.s32.totalorder %s277, 1
                  %s282 = sphi %s239, %s239
                  %s283 = sphi %s237, %s237
                $region77: #{tpu_custom_call.1} parent=66 // loop_header_branch
                  %280 = sbr.rel (%p278) target = $region81
                $region78: #{tpu_custom_call.1} parent=66 // loop_body
                  %v284 = vld [vmem:[%s282] sm:$0xf]
                  %285 = vst [vmem:[%s283] sm:$0xf] %v284
                  %v286 = vld [vmem:[%s282 + $0x8] sm:$0xf]
                  %287 = vst [vmem:[%s283 + $0x4] sm:$0xf] %v286
                  %v288 = vld [vmem:[%s282 + $0x10] sm:$0xf]
                  %289 = vst [vmem:[%s283 + $0x8] sm:$0xf] %v288
                  %v290 = vld [vmem:[%s282 + $0x18] sm:$0xf]
                  %291 = vst [vmem:[%s283 + $0xc] sm:$0xf] %v290
                  %v292 = vld [vmem:[%s282 + $0x20] sm:$0xf]
                  %293 = vst [vmem:[%s283 + $0x10] sm:$0xf] %v292
                $region79: #{tpu_custom_call.1} parent=66 // loop_footer
                  %s281 = sadd.s32 1, %s277
                $region80: #{tpu_custom_call.1} parent=66 // loop_footer_branch
                  %276 = sbr.rel target = $region76
                $region81: #{tpu_custom_call.1} parent=66 // loop_exit
                  _
              $region67: #{tpu_custom_call.1} parent=51 // pred_fallthru
                _
            $region52: #{tpu_custom_call.1} parent=47 // pred_fallthru
              _
            // Predicated region
            $region53: #{tpu_custom_call.1} parent=47 // pred_check
              _
            $region54: #{tpu_custom_call.1} parent=47 // pred_check_branch
              %245 = sbr.rel (0) target = $region56
            $region55: #{tpu_custom_call.1} parent=47 // pred_region
              loop: start=0, step=1, limit=1
              $region57: #{tpu_custom_call.1} parent=55 // loop_pre_header
                _
              $region58: #{tpu_custom_call.1} parent=55 // loop_header
                %s248 = sphi 0, %s252
                %p249 = scmp.ge.s32.totalorder %s248, 1
                %s253 = sphi %s239, %s239
                %s254 = sphi %s237, %s237
              $region59: #{tpu_custom_call.1} parent=55 // loop_header_branch
                %251 = sbr.rel (%p249) target = $region63
              $region60: #{tpu_custom_call.1} parent=55 // loop_body
                %v255 = vld [vmem:[%s253] sm:$0xf]
                %256 = vst [vmem:[%s254] sm:$0xf] %v255
                %v257 = vld [vmem:[%s253 + $0x8] sm:$0xf]
                %258 = vst [vmem:[%s254 + $0x4] sm:$0xf] %v257
                %v259 = vld [vmem:[%s253 + $0x10] sm:$0xf]
                %260 = vst [vmem:[%s254 + $0x8] sm:$0xf] %v259
                %v261 = vld [vmem:[%s253 + $0x18] sm:$0xf]
                %262 = vst [vmem:[%s254 + $0xc] sm:$0xf] %v261
                %v263 = vld [vmem:[%s253 + $0x20] sm:$0xf]
                %264 = vst [vmem:[%s254 + $0x10] sm:$0xf] %v263
              $region61: #{tpu_custom_call.1} parent=55 // loop_footer
                %s252 = sadd.s32 1, %s248
              $region62: #{tpu_custom_call.1} parent=55 // loop_footer_branch
                %247 = sbr.rel target = $region58
              $region63: #{tpu_custom_call.1} parent=55 // loop_exit
                _
            $region56: #{tpu_custom_call.1} parent=47 // pred_fallthru
              _
          $region48: #{tpu_custom_call.1} parent=43 // pred_fallthru
            _
          %294 = vnop
        $region44: #{tpu_custom_call.1} parent=39 // pred_fallthru
          _
      $region40: #{tpu_custom_call.1} parent=5 // pred_fallthru
        _
      %p295 = scmp.le.s32.totalorder 1, %s16
      %p296 = scmp.lt.s32.totalorder %s16, 3
      %p297 = pnand %p295, %p296
      %p298 = pneg %p297
      // Predicated region
      $region82: #{tpu_custom_call.1} parent=5 // pred_check
        _
      $region83: #{tpu_custom_call.1} parent=5 // pred_check_branch
        %300 = sbr.rel (%p297) target = $region85
      $region84: #{tpu_custom_call.1} parent=5 // pred_region
        %s301 = ssub.s32 %s16, 1
        %s302 = sand.u32 %s29, 1
        %s303 = sand.u32 %s29, 1
        %s304 = smul.addr %s303, 20
        %s305 = scalar_lea.vmem [#allocation2], %s304
        // Predicated region
        $region86: #{tpu_custom_call.1} parent=84 // pred_check
          %p306 = pneg %p42
        $region87: #{tpu_custom_call.1} parent=84 // pred_check_branch
          %308 = sbr.rel (%p306) target = $region89
        $region88: #{tpu_custom_call.1} parent=84 // pred_region
          _
        $region89: #{tpu_custom_call.1} parent=84 // pred_fallthru
          _
        %s309 = sand.u32 %s29, 1
        %s310 = sand.u32 %s29, 1
        %s311 = smul.addr %s310, 20
        %s312 = scalar_lea.vmem [#allocation2], %s311
        %p313 = pneg %p42
        %p314 = pneg %p39
        %p315 = pneg %p63
        %p316 = pneg %p60
        %p317 = pneg %p84
        %p318 = pneg %p81
        %p319 = pneg %p105
        %p320 = pneg %p102
        %p321 = pneg %p126
        %p322 = pneg %p123
        %p323 = pneg %p147
        %p324 = pneg %p144
        %p325 = pneg %p168
        %p326 = pneg %p165
        %p327 = pneg %p194
        %p328 = pneg %p191
        %s329 = sand.u32 %s181, 1
        %s330 = scalar_lea.sflag [#allocation4], %s329
        %s331 = sand.u32 %s181, 1
        %s332 = smul.addr %s331, 2
        %s333 = scalar_lea.vmem [#allocation3], %s332
        %v335 = vld [vmem:[%s305] sm:$0xf]
        %v336 = vld [vmem:[%s305 + $0x4] sm:$0xf]
        %v337 = vld [vmem:[%s305 + $0x8] sm:$0xf]
        %v338 = vld [vmem:[%s305 + $0xc] sm:$0xf]
        %v339 = vld [vmem:[%s305 + $0x10] sm:$0x1]
        %v340 = vld [vmem:[%s1] sm:$0xf]
        %v341 = vld [vmem:[%s1 + $0x4] sm:$0xf]
        %v342 = vld [vmem:[%s1 + $0x8] sm:$0xf]
        %v343 = vld [vmem:[%s1 + $0xc] sm:$0xf]
        %v344 = vld [vmem:[%s1 + $0x10] sm:$0xf]
        %v345 = vld [vmem:[%s1 + $0x14] sm:$0xf]
        %v346 = vld [vmem:[%s1 + $0x18] sm:$0xf]
        %v347 = vld [vmem:[%s1 + $0x1c] sm:$0xf]
        %v348 = vld [vmem:[%s2] sm:$0xff]
        %v349 = vld [vmem:[%s2 + $0x8] sm:$0xff]
        %v350 = vld [vmem:[%s2 + $0x10] sm:$0xff]
        %v351 = vld [vmem:[%s2 + $0x18] sm:$0xff]
        %v352 = vld [vmem:[%s2 + $0x20] sm:$0xff]
        %v353 = vld [vmem:[%s2 + $0x28] sm:$0xff]
        %v354 = vld [vmem:[%s2 + $0x30] sm:$0xff]
        %v355 = vld [vmem:[%s2 + $0x38] sm:$0xff]
        %357 = vset.pattern.permute.xlu0 0
        %358 = vperm.xlu0 %357, %v348
        %v359 = vpop.permute.xlu0 %358
        %362 = vset.pattern.permute.xlu0 0
        %363 = vperm.xlu0 %362, %v349
        %v364 = vpop.permute.xlu0 %363
        %367 = vset.pattern.permute.xlu0 0
        %368 = vperm.xlu0 %367, %v350
        %v369 = vpop.permute.xlu0 %368
        %372 = vset.pattern.permute.xlu0 0
        %373 = vperm.xlu0 %372, %v351
        %v374 = vpop.permute.xlu0 %373
        %377 = vset.pattern.permute.xlu0 0
        %378 = vperm.xlu0 %377, %v352
        %v379 = vpop.permute.xlu0 %378
        %382 = vset.pattern.permute.xlu0 0
        %383 = vperm.xlu0 %382, %v353
        %v384 = vpop.permute.xlu0 %383
        %387 = vset.pattern.permute.xlu0 0
        %388 = vperm.xlu0 %387, %v354
        %v389 = vpop.permute.xlu0 %388
        %392 = vset.pattern.permute.xlu0 0
        %393 = vperm.xlu0 %392, %v355
        %v394 = vpop.permute.xlu0 %393
        %v404 = vunpack.c.l.b16 %v340
        %v405 = vunpack.c.l.b16 %v341
        %v406 = vunpack.c.l.b16 %v342
        %v407 = vunpack.c.l.b16 %v343
        %v408 = vunpack.c.l.b16 %v344
        %v409 = vunpack.c.l.b16 %v345
        %v410 = vunpack.c.l.b16 %v346
        %v411 = vunpack.c.l.b16 %v347
        %v412 = vpack.c.b16 %v405, %v404
        %v413 = vpack.c.b16 %v407, %v406
        %v414 = vpack.c.b16 %v409, %v408
        %v415 = vpack.c.b16 %v411, %v410
        %v421 = vunpack.c.l.b16 %v335
        %v422 = vunpack.c.l.b16 %v336
        %v423 = vunpack.c.l.b16 %v337
        %v424 = vunpack.c.l.b16 %v338
        %v425 = vunpack.c.l.b16 %v339
        %v426 = vpack.c.b16 %v422, %v421
        %v427 = vpack.c.b16 %v424, %v423
        %v428 = vpack.c.b16 %v425, %v425
        %vm431 = vcmask 277504
        %v433 = vsel %vm431, %v412, 0
        %v436 = vsel %vm431, %v413, 0
        %v439 = vsel %vm431, %v414, 0
        %v442 = vsel %vm431, %v415, 0
        %vm444 = vcmask 1040384
        %v446 = vsel %vm444, %v428, 0
        %448 = vmatprep.subr.bf16.mxu0 0
        %449 = vmatpush1.bf16.msra.mxu0 %v426
        %450 = vmatprep.subr.bf16.mxu0 0
        %451 = vmatpush1.bf16.msra.mxu0 %v427
        %452 = vmatprep.subr.bf16.mxu0 0
        %453 = vmatpush1.bf16.msra.mxu0 %v446
        %454 = vmatprep.subr.bf16.mxu0 0
        %455 = vmatpush1.bf16.msra.mxu0 0
        %456 = vmatprep.subr.bf16.mxu0 0
        %457 = vmatpush1.bf16.msra.mxu0 0
        %458 = vmatprep.subr.bf16.mxu0 0
        %459 = vmatpush1.bf16.msra.mxu0 0
        %460 = vmatprep.subr.bf16.mxu0 0
        %461 = vmatpush1.bf16.msra.mxu0 0
        %462 = vmatprep.subr.bf16.mxu0 0
        %463 = vmatpush1.bf16.msra.mxu0 0
        %464 = vmatprep.subr.bf16.mxu0 0
        %465 = vmatpush1.bf16.msra.mxu0 0
        %466 = vmatprep.subr.bf16.mxu0 0
        %467 = vmatpush1.bf16.msra.mxu0 0
        %468 = vmatprep.subr.bf16.mxu0 0
        %469 = vmatpush1.bf16.msra.mxu0 0
        %470 = vmatprep.subr.bf16.mxu0 0
        %471 = vmatpush1.bf16.msra.mxu0 0
        %472 = vmatprep.subr.bf16.mxu0 0
        %473 = vmatpush1.bf16.msra.mxu0 0
        %474 = vmatprep.subr.bf16.mxu0 0
        %475 = vmatpush1.bf16.msra.mxu0 0
        %476 = vmatprep.subr.bf16.mxu0 0
        %477 = vmatpush1.bf16.msra.mxu0 0
        %478 = vmatprep.subr.bf16.mxu0 0
        %479 = vmatpush1.bf16.msra.mxu0 0
        %480 = vmatprep.mubr.bf16.mxu0 0
        %481 = vmatmul.mubr.bf16.gmra.mrb[0].mxu0 %v433
        %v482 = vpop.f32.mrb[0].mxu0
        %v483 = vadd.f32 %v359, %v482
        %v484 = vpop.f32.mrb[0].mxu0
        %v485 = vpop.f32.mrb[0].mxu0
        %v486 = vadd.f32 %v364, %v485
        %v487 = vpop.f32.mrb[0].mxu0
        %488 = vmatprep.mubr.bf16.mxu0 0
        %489 = vmatmul.mubr.bf16.gmra.mrb[0].mxu0 %v436
        %v490 = vpop.f32.mrb[0].mxu0
        %v491 = vadd.f32 %v369, %v490
        %v492 = vpop.f32.mrb[0].mxu0
        %v493 = vpop.f32.mrb[0].mxu0
        %v494 = vadd.f32 %v374, %v493
        %v495 = vpop.f32.mrb[0].mxu0
        %496 = vmatprep.mubr.bf16.mxu0 0
        %497 = vmatmul.mubr.bf16.gmra.mrb[0].mxu0 %v439
        %v498 = vpop.f32.mrb[0].mxu0
        %v499 = vadd.f32 %v379, %v498
        %v500 = vpop.f32.mrb[0].mxu0
        %v501 = vpop.f32.mrb[0].mxu0
        %v502 = vadd.f32 %v384, %v501
        %v503 = vpop.f32.mrb[0].mxu0
        %504 = vmatprep.mubr.bf16.mxu0 0
        %505 = vmatmul.mubr.bf16.gmra.mrb[0].mxu0 %v442
        %v506 = vpop.f32.mrb[0].mxu0
        %v507 = vadd.f32 %v389, %v506
        %v508 = vpop.f32.mrb[0].mxu0
        %v509 = vpop.f32.mrb[0].mxu0
        %v510 = vadd.f32 %v394, %v509
        %v511 = vpop.f32.mrb[0].mxu0
        %512 = vdwg.mxu0
        %v513 = vmax.f32 %v483, 0.0
        %v514 = vmax.f32 %v486, 0.0
        %v515 = vmax.f32 %v491, 0.0
        %v516 = vmax.f32 %v494, 0.0
        %v517 = vmax.f32 %v499, 0.0
        %v518 = vmax.f32 %v502, 0.0
        %v519 = vmax.f32 %v507, 0.0
        %v520 = vmax.f32 %v510, 0.0
        %v521 = vpack.c.bf16 %v514, %v513
        %v522 = vpack.c.bf16 %v516, %v515
        %v523 = vpack.c.bf16 %v518, %v517
        %v524 = vpack.c.bf16 %v520, %v519
        %v525 = vld [vmem:[%s3] sm:$0xf]
        %v526 = vld [vmem:[%s3 + $0x4] sm:$0xf]
        %v527 = vld [vmem:[%s3 + $0x8] sm:$0xf]
        %v528 = vld [vmem:[%s3 + $0xc] sm:$0xf]
        %v529 = vld [vmem:[%s4] sm:$0xff]
        %v530 = vld [vmem:[%s4 + $0x8] sm:$0xff]
        %v531 = vld [vmem:[%s4 + $0x10] sm:$0xff]
        %v532 = vld [vmem:[%s4 + $0x18] sm:$0xff]
        %534 = vset.pattern.permute.xlu0 0
        %535 = vperm.xlu0 %534, %v529
        %v536 = vpop.permute.xlu0 %535
        %539 = vset.pattern.permute.xlu0 0
        %540 = vperm.xlu0 %539, %v530
        %v541 = vpop.permute.xlu0 %540
        %544 = vset.pattern.permute.xlu0 0
        %545 = vperm.xlu0 %544, %v531
        %v546 = vpop.permute.xlu0 %545
        %549 = vset.pattern.permute.xlu0 0
        %550 = vperm.xlu0 %549, %v532
        %v551 = vpop.permute.xlu0 %550
        %v557 = vunpack.c.l.b16 %v525
        %v558 = vunpack.c.l.b16 %v526
        %v559 = vunpack.c.l.b16 %v527
        %v560 = vunpack.c.l.b16 %v528
        %v561 = vpack.c.b16 %v558, %v557
        %v562 = vpack.c.b16 %v560, %v559
        %vm563 = vcmask 523264
        %v565 = vsel %vm563, %v561, 0
        %v568 = vsel %vm563, %v562, 0
        %570 = vmatprep.subr.bf16.mxu0 0
        %571 = vmatpush1.bf16.msra.mxu0 %v521
        %572 = vmatprep.subr.bf16.mxu0 0
        %573 = vmatpush1.bf16.msra.mxu0 %v522
        %574 = vmatprep.subr.bf16.mxu0 0
        %575 = vmatpush1.bf16.msra.mxu0 %v523
        %576 = vmatprep.subr.bf16.mxu0 0
        %577 = vmatpush1.bf16.msra.mxu0 %v524
        %578 = vmatprep.subr.bf16.mxu0 0
        %579 = vmatpush1.bf16.msra.mxu0 0
        %580 = vmatprep.subr.bf16.mxu0 0
        %581 = vmatpush1.bf16.msra.mxu0 0
        %582 = vmatprep.subr.bf16.mxu0 0
        %583 = vmatpush1.bf16.msra.mxu0 0
        %584 = vmatprep.subr.bf16.mxu0 0
        %585 = vmatpush1.bf16.msra.mxu0 0
        %586 = vmatprep.subr.bf16.mxu0 0
        %587 = vmatpush1.bf16.msra.mxu0 0
        %588 = vmatprep.subr.bf16.mxu0 0
        %589 = vmatpush1.bf16.msra.mxu0 0
        %590 = vmatprep.subr.bf16.mxu0 0
        %591 = vmatpush1.bf16.msra.mxu0 0
        %592 = vmatprep.subr.bf16.mxu0 0
        %593 = vmatpush1.bf16.msra.mxu0 0
        %594 = vmatprep.subr.bf16.mxu0 0
        %595 = vmatpush1.bf16.msra.mxu0 0
        %596 = vmatprep.subr.bf16.mxu0 0
        %597 = vmatpush1.bf16.msra.mxu0 0
        %598 = vmatprep.subr.bf16.mxu0 0
        %599 = vmatpush1.bf16.msra.mxu0 0
        %600 = vmatprep.subr.bf16.mxu0 0
        %601 = vmatpush1.bf16.msra.mxu0 0
        %602 = vmatprep.mubr.bf16.mxu0 0
        %603 = vmatmul.mubr.bf16.gmra.mrb[0].mxu0 %v565
        %v604 = vpop.f32.mrb[0].mxu0
        %v605 = vadd.f32 %v536, %v604
        %v606 = vpop.f32.mrb[0].mxu0
        %v607 = vpop.f32.mrb[0].mxu0
        %v608 = vadd.f32 %v541, %v607
        %v609 = vpop.f32.mrb[0].mxu0
        %610 = vmatprep.mubr.bf16.mxu0 0
        %611 = vmatmul.mubr.bf16.gmra.mrb[0].mxu0 %v568
        %v612 = vpop.f32.mrb[0].mxu0
        %v613 = vadd.f32 %v546, %v612
        %v614 = vpop.f32.mrb[0].mxu0
        %v615 = vpop.f32.mrb[0].mxu0
        %v616 = vadd.f32 %v551, %v615
        %v617 = vpop.f32.mrb[0].mxu0
        %618 = vdwg.mxu0
        %v619 = vmax.f32 %v605, 0.0
        %v620 = vmax.f32 %v608, 0.0
        %v621 = vmax.f32 %v613, 0.0
        %v622 = vmax.f32 %v616, 0.0
        %v623 = vpack.c.bf16 %v620, %v619
        %v624 = vpack.c.bf16 %v622, %v621
        %v625 = vld [vmem:[%s5] sm:$0x1]
        %v626 = vld [vmem:[%s6] sm:$0x3]
        %628 = vset.pattern.permute.xlu0 0
        %629 = vperm.xlu0 %628, %v626
        %v630 = vpop.permute.xlu0 %629
        %vm632 = vcmask 261120
        %v634 = vsel %vm632, %v625, 0
        %636 = vmatprep.subr.bf16.mxu0 0
        %637 = vmatpush1.bf16.msra.mxu0 %v623
        %638 = vmatprep.subr.bf16.mxu0 0
        %639 = vmatpush1.bf16.msra.mxu0 %v624
        %640 = vmatprep.subr.bf16.mxu0 0
        %641 = vmatpush1.bf16.msra.mxu0 0
        %642 = vmatprep.subr.bf16.mxu0 0
        %643 = vmatpush1.bf16.msra.mxu0 0
        %644 = vmatprep.subr.bf16.mxu0 0
        %645 = vmatpush1.bf16.msra.mxu0 0
        %646 = vmatprep.subr.bf16.mxu0 0
        %647 = vmatpush1.bf16.msra.mxu0 0
        %648 = vmatprep.subr.bf16.mxu0 0
        %649 = vmatpush1.bf16.msra.mxu0 0
        %650 = vmatprep.subr.bf16.mxu0 0
        %651 = vmatpush1.bf16.msra.mxu0 0
        %652 = vmatprep.subr.bf16.mxu0 0
        %653 = vmatpush1.bf16.msra.mxu0 0
        %654 = vmatprep.subr.bf16.mxu0 0
        %655 = vmatpush1.bf16.msra.mxu0 0
        %656 = vmatprep.subr.bf16.mxu0 0
        %657 = vmatpush1.bf16.msra.mxu0 0
        %658 = vmatprep.subr.bf16.mxu0 0
        %659 = vmatpush1.bf16.msra.mxu0 0
        %660 = vmatprep.subr.bf16.mxu0 0
        %661 = vmatpush1.bf16.msra.mxu0 0
        %662 = vmatprep.subr.bf16.mxu0 0
        %663 = vmatpush1.bf16.msra.mxu0 0
        %664 = vmatprep.subr.bf16.mxu0 0
        %665 = vmatpush1.bf16.msra.mxu0 0
        %666 = vmatprep.subr.bf16.mxu0 0
        %667 = vmatpush1.bf16.msra.mxu0 0
        %668 = vmatprep.mubr.bf16.mxu0 0
        %669 = vmatmul.mubr.bf16.gmra.mrb[0].mxu0 %v634
        %v670 = vpop.f32.mrb[0].mxu0
        %v671 = vadd.f32 %v630, %v670
        %v672 = vpop.f32.mrb[0].mxu0
        %v673 = vpop.f32.mrb[0].mxu0
        %v674 = vpop.f32.mrb[0].mxu0
        %675 = vdwg.mxu0
        %676 = vst [vmem:[%s333] sm:$0x3] %v671
        %s677 = sand.u32 %s181, 1
        %s678 = scalar_lea.sflag [#allocation4], %s677
        %s679 = sand.u32 %s181, 1
        %s680 = smul.addr %s679, 2
        %s681 = scalar_lea.vmem [#allocation3], %s680
        // Predicated region
        $region90: #{tpu_custom_call.1} parent=84 // pred_check
          %p682 = pneg %p191
        $region91: #{tpu_custom_call.1} parent=84 // pred_check_branch
          %684 = sbr.rel (%p682) target = $region93
        $region92: #{tpu_custom_call.1} parent=84 // pred_region
          %s686 = ssub.s32 32, 32
          %687 = vsyncadd %s678, %s686
          %s688 = smul.addr %s21, 32
          %s689 = scalar_lea.hbm %s7, %s688
          %s691 = sshll.u32 %s681, 4
          %s692 = int_to_ptr.vmem [resolvable:$true] %s691
          %694 = dma.vmem_to_hbm [thread:$0]  %s692, 32, %s689, %s678
        $region93: #{tpu_custom_call.1} parent=84 // pred_fallthru
          _
      $region85: #{tpu_custom_call.1} parent=5 // pred_fallthru
        _
      %p695 = scmp.le.s32.totalorder 2, %s16
      // Predicated region
      $region94: #{tpu_custom_call.1} parent=5 // pred_check
        %p696 = pneg %p695
      $region95: #{tpu_custom_call.1} parent=5 // pred_check_branch
        %698 = sbr.rel (%p696) target = $region97
      $region96: #{tpu_custom_call.1} parent=5 // pred_region
        %s699 = ssub.s32 %s16, 2
        // Predicated region
        $region98: #{tpu_custom_call.1} parent=96 // pred_check
          %p700 = pneg %p197
        $region99: #{tpu_custom_call.1} parent=96 // pred_check_branch
          %702 = sbr.rel (%p700) target = $region101
        $region100: #{tpu_custom_call.1} parent=96 // pred_region
          %s703 = sand.u32 %s182, 1
          %s704 = scalar_lea.sflag [#allocation4], %s703
          %s705 = sand.u32 %s182, 1
          %s706 = smul.addr %s705, 2
          %s707 = scalar_lea.vmem [#allocation3], %s706
          %708 = dma.done %s704, 32
        $region101: #{tpu_custom_call.1} parent=96 // pred_fallthru
          _
      $region97: #{tpu_custom_call.1} parent=5 // pred_fallthru
        _
    $region6: #{tpu_custom_call.1} parent=1 // loop_footer
      %s20 = sadd.s32 1, %s16
    $region7: #{tpu_custom_call.1} parent=1 // loop_footer_branch
      %15 = sbr.rel target = $region3
    $region8: #{tpu_custom_call.1} parent=1 // loop_exit
      _
    %709 = vsyncpa [#allocation4], 1
    %s710 = scalar_lea.sflag [#allocation4], 1
    %711 = vsyncpa %s710, 1

</llo_original>
